<compile_context>
chip_gen: v6e
topology: v6e:2x2x1
jax: 0.10.0
libtpu: 0.0.40
codegen_flags: <defaults>
</compile_context>

<pallas_src>
import functools

import jax
import jax.numpy as jnp
from jax.experimental import pallas as pl
from jax.experimental.pallas import tpu as pltpu

_NEG = -1e30  # masked-max sentinel


# --------------------------- shared epilogue pieces ---------------------------
def _block_diag_mask(b, bn, n_pair):
    """mask[r, c] = r*n_pair <= c < (r+1)*n_pair (row r's caption block)."""
    row_ids = jax.lax.broadcasted_iota(jnp.int32, (b, 1), 0)      # (B, 1)
    col_ids = jax.lax.broadcasted_iota(jnp.int32, (1, bn), 1)     # (1, BN)
    lo = row_ids * n_pair                                          # (B, 1)
    return (col_ids >= lo) & (col_ids < lo + n_pair)               # (B, BN)


def _milnce_loss_sum(x, mask):
    """Sum over rows of (denominator_lse - nominator_lse) for one (B, BN) score
    matrix.  Returns shape (1, 1)."""
    # Shared shift m[r] = max over (row r  U  column block r).
    m_row = jnp.max(x, axis=1, keepdims=True)                                   # (B, 1)
    col_max = jnp.max(x, axis=0, keepdims=True)                                 # (1, BN)
    cb_max = jnp.max(jnp.where(mask, col_max, _NEG), axis=1, keepdims=True)     # (B, 1)
    m = jnp.maximum(m_row, cb_max)                                              # (B, 1)

    # exp pass 1 (row shift): denominator row sum AND nominator diag-block sum.
    er = jnp.exp(x - m)                                                         # (B, BN)
    s_row = jnp.sum(er, axis=1, keepdims=True)                                  # (B, 1)
    nom_sum = jnp.sum(jnp.where(mask, er, 0.0), axis=1, keepdims=True)          # (B, 1)

    # exp pass 2 (column-block shift): column c is shifted by m[block(c)], so the
    # per-block column sums are exactly the denominator's column-block terms.
    mpc = jnp.max(jnp.where(mask, m, _NEG), axis=0, keepdims=True)              # (1, BN)
    ec = jnp.exp(x - mpc)                                                       # (B, BN)
    col_sums = jnp.sum(ec, axis=0, keepdims=True)                               # (1, BN)
    s_col = jnp.sum(jnp.where(mask, col_sums, 0.0), axis=1, keepdims=True)      # (B, 1)

    # den - nom per row; the common shift m cancels exactly.  nom_sum is clamped
    # so extreme off-diagonal dominance yields a huge finite loss, not inf.
    per_row = jnp.log(s_row + s_col) - jnp.log(jnp.maximum(nom_sum, 1e-37))     # (B, 1)
    return jnp.sum(per_row, axis=0, keepdims=True)                              # (1, 1)


def _partial_scores(v_ref, t_ref):
    # bf16 operands on the MXU (in-kernel VPU cast, hidden under DMA/MXU), f32
    # accumulation; contraction on the shared last (lane) dim -> no explicit .T.
    return jax.lax.dot_general(
        v_ref[...].astype(jnp.bfloat16), t_ref[...].astype(jnp.bfloat16),
        dimension_numbers=(((1,), (1,)), ((), ())),
        preferred_element_type=jnp.float32)


# --------------------------------- kernels ------------------------------------
def _fused_kernel_single(v_ref, tw_ref, ta_ref, out_ref, *, n_pair, scale):
    """nk == 1: whole contraction in one step -- no scratch accumulator."""
    xw = _partial_scores(v_ref, tw_ref)                  # (B, BN) f32
    xa = _partial_scores(v_ref, ta_ref)                  # (B, BN) f32
    b, bn = xw.shape
    mask = _block_diag_mask(b, bn, n_pair)
    out_ref[...] = (_milnce_loss_sum(xw, mask) + _milnce_loss_sum(xa, mask)) * scale


def _fused_kernel_ktiled(v_ref, tw_ref, ta_ref, out_ref, accw_ref, acca_ref, *,
                         n_pair, scale):
    """K-streamed variant: accumulate both score matrices, shared epilogue at end."""
    k = pl.program_id(0)
    nk = pl.num_programs(0)
    pw = _partial_scores(v_ref, tw_ref)
    pa = _partial_scores(v_ref, ta_ref)

    @pl.when(k == 0)
    def _first():                      # assign: no separate zeros-init pass
        accw_ref[...] = pw
        acca_ref[...] = pa

    @pl.when(k > 0)
    def _rest():
        accw_ref[...] += pw
        acca_ref[...] += pa

    @pl.when(k == nk - 1)
    def _epilogue():
        xw = accw_ref[...]
        xa = acca_ref[...]
        b, bn = xw.shape
        mask = _block_diag_mask(b, bn, n_pair)
        out_ref[...] = (_milnce_loss_sum(xw, mask) + _milnce_loss_sum(xa, mask)) * scale


# --------------------------------- wrapper ------------------------------------
def _vmem_budget_bytes():
    """Generation-aware scoped-VMEM budget (~48 MiB on v7x, ~96 MiB on v5e/v6e)."""
    try:
        cap = int(pltpu.get_tpu_info().vmem_capacity_bytes)
    except Exception:
        cap = 128 * 1024 * 1024
    return (cap * 3) // 4


def _pick_tk(b, bn, d, budget):
    """Largest legal K-tile that fits the budget (full D preferred -> nk == 1)."""
    def step_bytes(tk, nk):
        inputs = 2 * 4 * (b + 2 * bn) * tk           # f32 tiles, double-buffered
        acc = 0 if nk == 1 else 2 * 4 * b * bn       # two f32 score accumulators
        epilogue = 8 * 4 * b * bn                    # rough bound on temporaries
        return inputs + acc + epilogue

    candidates = [d] + [t for t in (8192, 4096, 2048, 1024, 512, 256, 128)
                        if t < d and d % t == 0]
    for tk in candidates:
        if step_bytes(tk, d // tk) <= budget:
            return tk
    return candidates[-1]


def milnce_dual(video_embd, text_embd_aws, text_embd_whisper):
    """Pallas implementation of MILNCE_Dual.forward."""
    B, D = video_embd.shape
    BN, D2 = text_embd_aws.shape
    assert D2 == D and text_embd_whisper.shape == (BN, D)
    assert BN % B == 0
    n_pair = BN // B

    budget = _vmem_budget_bytes()
    tk = _pick_tk(B, BN, D, budget)
    nk = D // tk
    scale = 0.5 / B  # mean over rows AND average of the two losses

    in_specs = [
        pl.BlockSpec((B, tk), lambda k: (0, k)),     # video K-slice (f32 in HBM)
        pl.BlockSpec((BN, tk), lambda k: (0, k)),    # whisper text K-slice
        pl.BlockSpec((BN, tk), lambda k: (0, k)),    # aws text K-slice
    ]
    out_spec = pl.BlockSpec((1, 1), lambda k: (0, 0))

    if nk == 1:
        kernel = functools.partial(_fused_kernel_single, n_pair=n_pair, scale=scale)
        scratch = []
    else:
        kernel = functools.partial(_fused_kernel_ktiled, n_pair=n_pair, scale=scale)
        scratch = [pltpu.VMEM((B, BN), jnp.float32),
                   pltpu.VMEM((B, BN), jnp.float32)]

    loss = pl.pallas_call(
        kernel,
        out_shape=jax.ShapeDtypeStruct((1, 1), jnp.float32),
        grid_spec=pltpu.PrefetchScalarGridSpec(
            num_scalar_prefetch=0,
            grid=(nk,),
            in_specs=in_specs,
            out_specs=out_spec,
            scratch_shapes=scratch,
        ),
        compiler_params=pltpu.CompilerParams(
            dimension_semantics=("arbitrary",),   # K is a reduction axis
            vmem_limit_bytes=budget,
        ),
    )(video_embd, text_embd_whisper, text_embd_aws)

    return loss[0, 0]


# ---------------- pure-JAX reference (mirrors the PyTorch MILNCELoss) ----------------
def _milnce_ref(video_embd, text_embd):
    x = video_embd @ text_embd.T
    B = video_embd.shape[0]
    x = x.reshape(B, B, -1)
    nominator = (x * jnp.eye(B, dtype=x.dtype)[:, :, None]).sum(axis=1)
    nominator = jax.scipy.special.logsumexp(nominator, axis=1)
    denominator = jnp.concatenate(
        (x, jnp.transpose(x, (1, 0, 2))), axis=1).reshape(B, -1)
    denominator = jax.scipy.special.logsumexp(denominator, axis=1)
    return jnp.mean(denominator - nominator)


def _milnce_dual_ref(video_embd, text_embd_aws, text_embd_whisper):
    loss_1 = _milnce_ref(video_embd, text_embd_whisper)
    loss_2 = _milnce_ref(video_embd, text_embd_aws)
    return (loss_1 + loss_2) / 2


if __name__ == "__main__":
    B, D, N_PAIR = 8, 128, 2  # 8 videos, 128-d embeddings, 2 candidate captions/video

    key = jax.random.PRNGKey(0)
    k_v, k_a, k_w = jax.random.split(key, 3)
    video_embd = jax.random.normal(k_v, (B, D), dtype=jnp.float32)
    text_embd_aws = jax.random.normal(k_a, (B * N_PAIR, D), dtype=jnp.float32)
    text_embd_whisper = jax.random.normal(k_w, (B * N_PAIR, D), dtype=jnp.float32)

    loss = milnce_dual(video_embd, text_embd_aws, text_embd_whisper)
    loss = jax.block_until_ready(loss)

    # Tight check against the reference evaluated on bf16-rounded inputs
    # (the kernel feeds bf16 operands to the MXU with f32 accumulation).
    v16 = video_embd.astype(jnp.bfloat16).astype(jnp.float32)
    a16 = text_embd_aws.astype(jnp.bfloat16).astype(jnp.float32)
    w16 = text_embd_whisper.astype(jnp.bfloat16).astype(jnp.float32)
    ref_bf16 = _milnce_dual_ref(v16, a16, w16)
    assert jnp.allclose(loss, ref_bf16, rtol=1e-3, atol=1e-3), (loss, ref_bf16)

    # Loose check against the full-f32 reference (covers bf16 operand rounding).
    ref_f32 = _milnce_dual_ref(video_embd, text_embd_aws, text_embd_whisper)
    assert jnp.allclose(loss, ref_f32, rtol=3e-2, atol=3e-1), (loss, ref_f32)

    print("KERNEL_OK")
</pallas_src>

<mosaic_0001>
module attributes {stable_mosaic.version = 11 : i64} {
  func.func @_fused_kernel_single(%arg0: i32, %arg1: memref<8x128xf32, #tpu.memory_space<vmem>>, %arg2: memref<16x128xf32, #tpu.memory_space<vmem>>, %arg3: memref<16x128xf32, #tpu.memory_space<vmem>>, %arg4: memref<1x1xf32, #tpu.memory_space<vmem>>) attributes {dimension_semantics = [#tpu.dimension_semantics<arbitrary>], iteration_bounds = array<i64: 1>, scalar_prefetch = 0 : i64, scratch_operands = 0 : i64, tpu.core_type = #tpu.core_type<tc>, window_params = [{transform_indices = @transform_0, window_bounds = array<i64: 8, 128>}, {transform_indices = @transform_1, window_bounds = array<i64: 16, 128>}, {transform_indices = @transform_2, window_bounds = array<i64: 16, 128>}, {pipeline_mode = #tpu.pipeline_mode<synchronous>, transform_indices = @transform_3, window_bounds = array<i64: 1, 1>}]} {
    %c0 = arith.constant 0 : index
    %c0_0 = arith.constant 0 : index
    %0 = vector.load %arg1[%c0, %c0_0] : memref<8x128xf32, #tpu.memory_space<vmem>>, vector<8x128xf32>
    %1 = arith.truncf %0 : vector<8x128xf32> to vector<8x128xbf16>
    %c0_1 = arith.constant 0 : index
    %c0_2 = arith.constant 0 : index
    %2 = vector.load %arg2[%c0_1, %c0_2] : memref<16x128xf32, #tpu.memory_space<vmem>>, vector<16x128xf32>
    %3 = arith.truncf %2 : vector<16x128xf32> to vector<16x128xbf16>
    %cst = arith.constant dense<0.000000e+00> : vector<8x16xf32>
    %4 = tpu.matmul %1, %3, %cst {dimension_numbers = #tpu.dot_dimension_numbers<[1], [1], [0], [0], [0, 0, 1, 0], [], []>} : vector<8x128xbf16>, vector<16x128xbf16>, vector<8x16xf32> -> vector<8x16xf32>
    %c0_3 = arith.constant 0 : index
    %c0_4 = arith.constant 0 : index
    %5 = vector.load %arg1[%c0_3, %c0_4] : memref<8x128xf32, #tpu.memory_space<vmem>>, vector<8x128xf32>
    %6 = arith.truncf %5 : vector<8x128xf32> to vector<8x128xbf16>
    %c0_5 = arith.constant 0 : index
    %c0_6 = arith.constant 0 : index
    %7 = vector.load %arg3[%c0_5, %c0_6] : memref<16x128xf32, #tpu.memory_space<vmem>>, vector<16x128xf32>
    %8 = arith.truncf %7 : vector<16x128xf32> to vector<16x128xbf16>
    %cst_7 = arith.constant dense<0.000000e+00> : vector<8x16xf32>
    %9 = tpu.matmul %6, %8, %cst_7 {dimension_numbers = #tpu.dot_dimension_numbers<[1], [1], [0], [0], [0, 0, 1, 0], [], []>} : vector<8x128xbf16>, vector<16x128xbf16>, vector<8x16xf32> -> vector<8x16xf32>
    %10 = tpu.iota {dimensions = array<i32: 0>} : vector<8x1xi32>
    %11 = tpu.iota {dimensions = array<i32: 1>} : vector<1x16xi32>
    %c2_i32 = arith.constant 2 : i32
    %12 = vector.broadcast %c2_i32 : i32 to vector<8x1xi32>
    %13 = arith.muli %10, %12 : vector<8x1xi32>
    %14 = vector.broadcast %11 : vector<1x16xi32> to vector<8x16xi32>
    %15 = vector.broadcast %13 : vector<8x1xi32> to vector<8x16xi32>
    %16 = arith.cmpi sge, %14, %15 : vector<8x16xi32>
    %c2_i32_8 = arith.constant 2 : i32
    %17 = vector.broadcast %c2_i32_8 : i32 to vector<8x1xi32>
    %18 = arith.addi %13, %17 : vector<8x1xi32>
    %19 = vector.broadcast %11 : vector<1x16xi32> to vector<8x16xi32>
    %20 = vector.broadcast %18 : vector<8x1xi32> to vector<8x16xi32>
    %21 = arith.cmpi slt, %19, %20 : vector<8x16xi32>
    %22 = arith.andi %16, %21 : vector<8x16xi1>
    %cst_9 = arith.constant dense<0xFF800000> : vector<8xf32>
    %23 = vector.multi_reduction <maximumf>, %4, %cst_9 [1] : vector<8x16xf32> to vector<8xf32>
    %24 = vector.shape_cast %23 : vector<8xf32> to vector<8x1xf32>
    %cst_10 = arith.constant dense<0xFF800000> : vector<16xf32>
    %25 = vector.multi_reduction <maximumf>, %4, %cst_10 [0] : vector<8x16xf32> to vector<16xf32>
    %26 = vector.shape_cast %25 : vector<16xf32> to vector<1x16xf32>
    %cst_11 = arith.constant -1.000000e+30 : f32
    %27 = vector.shape_cast %26 : vector<1x16xf32> to vector<1x16xf32>
    %28 = vector.broadcast %27 : vector<1x16xf32> to vector<8x16xf32>
    %29 = vector.broadcast %cst_11 : f32 to vector<8x16xf32>
    %30 = arith.select %22, %28, %29 : vector<8x16xi1>, vector<8x16xf32>
    %cst_12 = arith.constant dense<0xFF800000> : vector<8xf32>
    %31 = vector.multi_reduction <maximumf>, %30, %cst_12 [1] : vector<8x16xf32> to vector<8xf32>
    %32 = vector.shape_cast %31 : vector<8xf32> to vector<8x1xf32>
    %33 = arith.maximumf %24, %32 : vector<8x1xf32>
    %34 = vector.broadcast %33 : vector<8x1xf32> to vector<8x16xf32>
    %35 = arith.subf %4, %34 : vector<8x16xf32>
    %36 = math.exp %35 : vector<8x16xf32>
    %cst_13 = arith.constant dense<0.000000e+00> : vector<8xf32>
    %37 = vector.multi_reduction <add>, %36, %cst_13 [1] : vector<8x16xf32> to vector<8xf32>
    %38 = vector.shape_cast %37 : vector<8xf32> to vector<8x1xf32>
    %cst_14 = arith.constant 0.000000e+00 : f32
    %39 = vector.broadcast %cst_14 : f32 to vector<8x16xf32>
    %40 = arith.select %22, %36, %39 : vector<8x16xi1>, vector<8x16xf32>
    %cst_15 = arith.constant dense<0.000000e+00> : vector<8xf32>
    %41 = vector.multi_reduction <add>, %40, %cst_15 [1] : vector<8x16xf32> to vector<8xf32>
    %42 = vector.shape_cast %41 : vector<8xf32> to vector<8x1xf32>
    %cst_16 = arith.constant -1.000000e+30 : f32
    %43 = vector.shape_cast %33 : vector<8x1xf32> to vector<8x1xf32>
    %44 = vector.broadcast %43 : vector<8x1xf32> to vector<8x16xf32>
    %45 = vector.broadcast %cst_16 : f32 to vector<8x16xf32>
    %46 = arith.select %22, %44, %45 : vector<8x16xi1>, vector<8x16xf32>
    %cst_17 = arith.constant dense<0xFF800000> : vector<16xf32>
    %47 = vector.multi_reduction <maximumf>, %46, %cst_17 [0] : vector<8x16xf32> to vector<16xf32>
    %48 = vector.shape_cast %47 : vector<16xf32> to vector<1x16xf32>
    %49 = vector.broadcast %48 : vector<1x16xf32> to vector<8x16xf32>
    %50 = arith.subf %4, %49 : vector<8x16xf32>
    %51 = math.exp %50 : vector<8x16xf32>
    %cst_18 = arith.constant dense<0.000000e+00> : vector<16xf32>
    %52 = vector.multi_reduction <add>, %51, %cst_18 [0] : vector<8x16xf32> to vector<16xf32>
    %53 = vector.shape_cast %52 : vector<16xf32> to vector<1x16xf32>
    %cst_19 = arith.constant 0.000000e+00 : f32
    %54 = vector.shape_cast %53 : vector<1x16xf32> to vector<1x16xf32>
    %55 = vector.broadcast %54 : vector<1x16xf32> to vector<8x16xf32>
    %56 = vector.broadcast %cst_19 : f32 to vector<8x16xf32>
    %57 = arith.select %22, %55, %56 : vector<8x16xi1>, vector<8x16xf32>
    %cst_20 = arith.constant dense<0.000000e+00> : vector<8xf32>
    %58 = vector.multi_reduction <add>, %57, %cst_20 [1] : vector<8x16xf32> to vector<8xf32>
    %59 = vector.shape_cast %58 : vector<8xf32> to vector<8x1xf32>
    %60 = arith.addf %38, %59 : vector<8x1xf32>
    %61 = math.log %60 : vector<8x1xf32>
    %cst_21 = arith.constant 9.99999991E-38 : f32
    %62 = vector.broadcast %cst_21 : f32 to vector<8x1xf32>
    %63 = arith.maximumf %42, %62 : vector<8x1xf32>
    %64 = math.log %63 : vector<8x1xf32>
    %65 = arith.subf %61, %64 : vector<8x1xf32>
    %cst_22 = arith.constant dense<0.000000e+00> : vector<1xf32>
    %66 = vector.multi_reduction <add>, %65, %cst_22 [0] : vector<8x1xf32> to vector<1xf32>
    %67 = vector.shape_cast %66 : vector<1xf32> to vector<1x1xf32>
    %cst_23 = arith.constant dense<0xFF800000> : vector<8xf32>
    %68 = vector.multi_reduction <maximumf>, %9, %cst_23 [1] : vector<8x16xf32> to vector<8xf32>
    %69 = vector.shape_cast %68 : vector<8xf32> to vector<8x1xf32>
    %cst_24 = arith.constant dense<0xFF800000> : vector<16xf32>
    %70 = vector.multi_reduction <maximumf>, %9, %cst_24 [0] : vector<8x16xf32> to vector<16xf32>
    %71 = vector.shape_cast %70 : vector<16xf32> to vector<1x16xf32>
    %cst_25 = arith.constant -1.000000e+30 : f32
    %72 = vector.shape_cast %71 : vector<1x16xf32> to vector<1x16xf32>
    %73 = vector.broadcast %72 : vector<1x16xf32> to vector<8x16xf32>
    %74 = vector.broadcast %cst_25 : f32 to vector<8x16xf32>
    %75 = arith.select %22, %73, %74 : vector<8x16xi1>, vector<8x16xf32>
    %cst_26 = arith.constant dense<0xFF800000> : vector<8xf32>
    %76 = vector.multi_reduction <maximumf>, %75, %cst_26 [1] : vector<8x16xf32> to vector<8xf32>
    %77 = vector.shape_cast %76 : vector<8xf32> to vector<8x1xf32>
    %78 = arith.maximumf %69, %77 : vector<8x1xf32>
    %79 = vector.broadcast %78 : vector<8x1xf32> to vector<8x16xf32>
    %80 = arith.subf %9, %79 : vector<8x16xf32>
    %81 = math.exp %80 : vector<8x16xf32>
    %cst_27 = arith.constant dense<0.000000e+00> : vector<8xf32>
    %82 = vector.multi_reduction <add>, %81, %cst_27 [1] : vector<8x16xf32> to vector<8xf32>
    %83 = vector.shape_cast %82 : vector<8xf32> to vector<8x1xf32>
    %cst_28 = arith.constant 0.000000e+00 : f32
    %84 = vector.broadcast %cst_28 : f32 to vector<8x16xf32>
    %85 = arith.select %22, %81, %84 : vector<8x16xi1>, vector<8x16xf32>
    %cst_29 = arith.constant dense<0.000000e+00> : vector<8xf32>
    %86 = vector.multi_reduction <add>, %85, %cst_29 [1] : vector<8x16xf32> to vector<8xf32>
    %87 = vector.shape_cast %86 : vector<8xf32> to vector<8x1xf32>
    %cst_30 = arith.constant -1.000000e+30 : f32
    %88 = vector.shape_cast %78 : vector<8x1xf32> to vector<8x1xf32>
    %89 = vector.broadcast %88 : vector<8x1xf32> to vector<8x16xf32>
    %90 = vector.broadcast %cst_30 : f32 to vector<8x16xf32>
    %91 = arith.select %22, %89, %90 : vector<8x16xi1>, vector<8x16xf32>
    %cst_31 = arith.constant dense<0xFF800000> : vector<16xf32>
    %92 = vector.multi_reduction <maximumf>, %91, %cst_31 [0] : vector<8x16xf32> to vector<16xf32>
    %93 = vector.shape_cast %92 : vector<16xf32> to vector<1x16xf32>
    %94 = vector.broadcast %93 : vector<1x16xf32> to vector<8x16xf32>
    %95 = arith.subf %9, %94 : vector<8x16xf32>
    %96 = math.exp %95 : vector<8x16xf32>
    %cst_32 = arith.constant dense<0.000000e+00> : vector<16xf32>
    %97 = vector.multi_reduction <add>, %96, %cst_32 [0] : vector<8x16xf32> to vector<16xf32>
    %98 = vector.shape_cast %97 : vector<16xf32> to vector<1x16xf32>
    %cst_33 = arith.constant 0.000000e+00 : f32
    %99 = vector.shape_cast %98 : vector<1x16xf32> to vector<1x16xf32>
    %100 = vector.broadcast %99 : vector<1x16xf32> to vector<8x16xf32>
    %101 = vector.broadcast %cst_33 : f32 to vector<8x16xf32>
    %102 = arith.select %22, %100, %101 : vector<8x16xi1>, vector<8x16xf32>
    %cst_34 = arith.constant dense<0.000000e+00> : vector<8xf32>
    %103 = vector.multi_reduction <add>, %102, %cst_34 [1] : vector<8x16xf32> to vector<8xf32>
    %104 = vector.shape_cast %103 : vector<8xf32> to vector<8x1xf32>
    %105 = arith.addf %83, %104 : vector<8x1xf32>
    %106 = math.log %105 : vector<8x1xf32>
    %cst_35 = arith.constant 9.99999991E-38 : f32
    %107 = vector.broadcast %cst_35 : f32 to vector<8x1xf32>
    %108 = arith.maximumf %87, %107 : vector<8x1xf32>
    %109 = math.log %108 : vector<8x1xf32>
    %110 = arith.subf %106, %109 : vector<8x1xf32>
    %cst_36 = arith.constant dense<0.000000e+00> : vector<1xf32>
    %111 = vector.multi_reduction <add>, %110, %cst_36 [0] : vector<8x1xf32> to vector<1xf32>
    %112 = vector.shape_cast %111 : vector<1xf32> to vector<1x1xf32>
    %113 = arith.addf %67, %112 : vector<1x1xf32>
    %cst_37 = arith.constant 6.250000e-02 : f32
    %114 = vector.broadcast %cst_37 : f32 to vector<1x1xf32>
    %115 = arith.mulf %113, %114 : vector<1x1xf32>
    %c0_38 = arith.constant 0 : index
    %c0_39 = arith.constant 0 : index
    %116 = vector.load %arg4[%c0_38, %c0_39] : memref<1x1xf32, #tpu.memory_space<vmem>>, vector<1x1xf32>
    tpu.vector_store %arg4[%c0_38, %c0_39], %115 {strides = array<i32>} : memref<1x1xf32, #tpu.memory_space<vmem>>, vector<1x1xf32>,
    return
  }
  func.func @transform_0(%arg0: i32) -> (i32, i32) {
    %c0_i32 = arith.constant 0 : i32
    %c0_i32_0 = arith.constant 0 : i32
    return %c0_i32, %arg0 : i32, i32
  }
  func.func @transform_1(%arg0: i32) -> (i32, i32) {
    %c0_i32 = arith.constant 0 : i32
    %c0_i32_0 = arith.constant 0 : i32
    return %c0_i32, %arg0 : i32, i32
  }
  func.func @transform_2(%arg0: i32) -> (i32, i32) {
    %c0_i32 = arith.constant 0 : i32
    %c0_i32_0 = arith.constant 0 : i32
    return %c0_i32, %arg0 : i32, i32
  }
  func.func @transform_3(%arg0: i32) -> (i32, i32) {
    %c0_i32 = arith.constant 0 : i32
    %c0_i32_0 = arith.constant 0 : i32
    %c0_i32_1 = arith.constant 0 : i32
    return %c0_i32, %c0_i32_0 : i32, i32
  }
}

</mosaic_0001>

<llo_original>
// kernel: tpu_custom_call.1
$region0: #{tpu_custom_call.1}
  #allocation0 [shape = 'u32[]', space=smem, size = 0x4, offset = 0x4, fixed_abs, tag = 'smem constant byte address 0x4 - core index']
  #allocation1 [shape = 'u32[144,128]{1,0:T(1,128)}', space=vmem, size = 0x12000, scoped, tag = 'internal scratch']
  %s0 = inlined_call_operand.hbm [shape: f32[8,128], index: 0, kind: input, shape index: {}]
  %s1 = inlined_call_operand.hbm [shape: f32[16,128], index: 1, kind: input, shape index: {}]
  %s2 = inlined_call_operand.hbm [shape: f32[16,128], index: 2, kind: input, shape index: {}]
  %s3 = inlined_call_operand.hbm [shape: f32[1,1], index: 3, kind: output, shape index: {}]
  %s4 = sld [smem:[#allocation0]]
  $region34: #{tpu_custom_call.1} parent=0
    _
  %s6 = ssub.s32 1, %s4
  %s7 = scalar_select 0, %s6, %s4
  $region1: #{tpu_custom_call.1} parent=0
    #allocation2 [shape = 'u8[4096]{0}', space=vmem, size = 0x1000, scoped, tag = 'input window, operand 0, single buffered']
    #allocation3 [shape = 's32[1]{0}', space=sflag, size = 0x4, scoped, tag = 'scoped memory for tpu_custom_call.1']
    #allocation4 [shape = 's32[1]{0}', space=sflag, size = 0x4, scoped, tag = 'scoped memory for tpu_custom_call.1']
    #allocation5 [shape = 'u8[8192]{0}', space=vmem, size = 0x2000, scoped, tag = 'input window, operand 1, single buffered']
    #allocation6 [shape = 's32[1]{0}', space=sflag, size = 0x4, scoped, tag = 'scoped memory for tpu_custom_call.1']
    #allocation7 [shape = 'u8[8192]{0}', space=vmem, size = 0x2000, scoped, tag = 'input window, operand 2, single buffered']
    #allocation8 [shape = 'u8[512]{0}', space=vmem, size = 0x400, scoped, tag = 'output window, operand 0, single buffered']
    %8 = vsyncpa [#allocation3], 0
    %9 = vsyncpa [#allocation6], 0
    %10 = vsyncpa [#allocation4], 0
    // Predicated region
    $region2: #{tpu_custom_call.1} parent=1 // pred_check
      _
    $region3: #{tpu_custom_call.1} parent=1 // pred_check_branch
      %12 = sbr.rel (0) target = $region5
    $region4: #{tpu_custom_call.1} parent=1 // pred_region
      %s14 = ssub.s32 128, 128
      %15 = vsyncadd [#allocation3], %s14
      %s17 = sshll.u32 [#allocation2], 4
      %s18 = int_to_ptr.vmem [resolvable:$true] %s17
      %20 = dma.hbm_to_vmem [thread:$0]  %s0, 128, %s18, [#allocation3]
    $region5: #{tpu_custom_call.1} parent=1 // pred_fallthru
      _
    // Predicated region
    $region6: #{tpu_custom_call.1} parent=1 // pred_check
      _
    $region7: #{tpu_custom_call.1} parent=1 // pred_check_branch
      %22 = sbr.rel (0) target = $region9
    $region8: #{tpu_custom_call.1} parent=1 // pred_region
      %s24 = ssub.s32 256, 256
      %25 = vsyncadd [#allocation6], %s24
      %s26 = sshll.u32 [#allocation5], 4
      %s27 = int_to_ptr.vmem [resolvable:$true] %s26
      %32 = dma.hbm_to_vmem [thread:$0]  %s1, 256, %s27, [#allocation6], 128, 128, 8
    $region9: #{tpu_custom_call.1} parent=1 // pred_fallthru
      _
    // Predicated region
    $region10: #{tpu_custom_call.1} parent=1 // pred_check
      _
    $region11: #{tpu_custom_call.1} parent=1 // pred_check_branch
      %34 = sbr.rel (0) target = $region13
    $region12: #{tpu_custom_call.1} parent=1 // pred_region
      %s36 = ssub.s32 256, 256
      %37 = vsyncadd [#allocation6], %s36
      %s38 = sshll.u32 [#allocation7], 4
      %s39 = int_to_ptr.vmem [resolvable:$true] %s38
      %44 = dma.hbm_to_vmem [thread:$0]  %s2, 256, %s39, [#allocation6], 128, 128, 8
    $region13: #{tpu_custom_call.1} parent=1 // pred_fallthru
      _
    // Predicated region
    $region14: #{tpu_custom_call.1} parent=1 // pred_check
      _
    $region15: #{tpu_custom_call.1} parent=1 // pred_check_branch
      %46 = sbr.rel (0) target = $region17
    $region16: #{tpu_custom_call.1} parent=1 // pred_region
      %47 = dma.done [#allocation3], 128
    $region17: #{tpu_custom_call.1} parent=1 // pred_fallthru
      _
    // Predicated region
    $region18: #{tpu_custom_call.1} parent=1 // pred_check
      _
    $region19: #{tpu_custom_call.1} parent=1 // pred_check_branch
      %49 = sbr.rel (0) target = $region21
    $region20: #{tpu_custom_call.1} parent=1 // pred_region
      %50 = dma.done [#allocation6], 256
    $region21: #{tpu_custom_call.1} parent=1 // pred_fallthru
      _
    // Predicated region
    $region22: #{tpu_custom_call.1} parent=1 // pred_check
      _
    $region23: #{tpu_custom_call.1} parent=1 // pred_check_branch
      %52 = sbr.rel (0) target = $region25
    $region24: #{tpu_custom_call.1} parent=1 // pred_region
      %53 = dma.done [#allocation6], 256
    $region25: #{tpu_custom_call.1} parent=1 // pred_fallthru
      _
    %v55 = vld [vmem:[#allocation2] sm:$0xff]
    %v56 = vpack.c.bf16 %v55, %v55
    %v57 = vld [vmem:[#allocation5] sm:$0xff]
    %v58 = vld [vmem:[#allocation5 + $0x8] sm:$0xff]
    %v59 = vpack.c.bf16 %v58, %v57
    %60 = vmatprep.subr.bf16.mxu0 0
    %61 = vmatpush1.bf16.xpose.msra.mxu0 0
    %62 = vmatprep.subr.bf16.mxu0 0
    %63 = vmatpush1.bf16.xpose.msra.mxu0 0
    %64 = vmatprep.subr.bf16.mxu0 0
    %65 = vmatpush1.bf16.xpose.msra.mxu0 0
    %66 = vmatprep.subr.bf16.mxu0 0
    %67 = vmatpush1.bf16.xpose.msra.mxu0 0
    %68 = vmatprep.subr.bf16.mxu0 0
    %69 = vmatpush1.bf16.xpose.msra.mxu0 0
    %70 = vmatprep.subr.bf16.mxu0 0
    %71 = vmatpush1.bf16.xpose.msra.mxu0 0
    %72 = vmatprep.subr.bf16.mxu0 0
    %73 = vmatpush1.bf16.xpose.msra.mxu0 0
    %74 = vmatprep.subr.bf16.mxu0 0
    %75 = vmatpush1.bf16.xpose.msra.mxu0 %v59
    %76 = vmatprep.subr.bf16.mxu0 0
    %77 = vmatpush2.bf16.xpose.msra.mxu0 0
    %78 = vmatprep.subr.bf16.mxu0 0
    %79 = vmatpush2.bf16.xpose.msra.mxu0 0
    %80 = vmatprep.subr.bf16.mxu0 0
    %81 = vmatpush2.bf16.xpose.msra.mxu0 0
    %82 = vmatprep.subr.bf16.mxu0 0
    %83 = vmatpush2.bf16.xpose.msra.mxu0 0
    %84 = vmatprep.subr.bf16.mxu0 0
    %85 = vmatpush2.bf16.xpose.msra.mxu0 0
    %86 = vmatprep.subr.bf16.mxu0 0
    %87 = vmatpush2.bf16.xpose.msra.mxu0 0
    %88 = vmatprep.subr.bf16.mxu0 0
    %89 = vmatpush2.bf16.xpose.msra.mxu0 0
    %90 = vmatprep.subr.bf16.mxu0 0
    %91 = vmatpush2.bf16.xpose.msra.mxu0 0
    %92 = vmatprep.mubr.bf16.mxu0 0
    %93 = vmatmul.mubr.bf16.gmra.mxu0 %v56
    %v94 = vpop.f32.mrf.mxu0
    %v95 = vadd.f32 0.0, %v94
    %v96 = vpop.f32.mrf.mxu0
    %v97 = vpop.f32.mrf.mxu0
    %v98 = vpop.f32.mrf.mxu0
    %99 = vdwg.mxu0
    %v100 = vld [vmem:[#allocation7] sm:$0xff]
    %v101 = vld [vmem:[#allocation7 + $0x8] sm:$0xff]
    %v102 = vpack.c.bf16 %v101, %v100
    %103 = vmatprep.subr.bf16.mxu0 0
    %104 = vmatpush1.bf16.xpose.msra.mxu0 0
    %105 = vmatprep.subr.bf16.mxu0 0
    %106 = vmatpush1.bf16.xpose.msra.mxu0 0
    %107 = vmatprep.subr.bf16.mxu0 0
    %108 = vmatpush1.bf16.xpose.msra.mxu0 0
    %109 = vmatprep.subr.bf16.mxu0 0
    %110 = vmatpush1.bf16.xpose.msra.mxu0 0
    %111 = vmatprep.subr.bf16.mxu0 0
    %112 = vmatpush1.bf16.xpose.msra.mxu0 0
    %113 = vmatprep.subr.bf16.mxu0 0
    %114 = vmatpush1.bf16.xpose.msra.mxu0 0
    %115 = vmatprep.subr.bf16.mxu0 0
    %116 = vmatpush1.bf16.xpose.msra.mxu0 0
    %117 = vmatprep.subr.bf16.mxu0 0
    %118 = vmatpush1.bf16.xpose.msra.mxu0 %v102
    %119 = vmatprep.subr.bf16.mxu0 0
    %120 = vmatpush2.bf16.xpose.msra.mxu0 0
    %121 = vmatprep.subr.bf16.mxu0 0
    %122 = vmatpush2.bf16.xpose.msra.mxu0 0
    %123 = vmatprep.subr.bf16.mxu0 0
    %124 = vmatpush2.bf16.xpose.msra.mxu0 0
    %125 = vmatprep.subr.bf16.mxu0 0
    %126 = vmatpush2.bf16.xpose.msra.mxu0 0
    %127 = vmatprep.subr.bf16.mxu0 0
    %128 = vmatpush2.bf16.xpose.msra.mxu0 0
    %129 = vmatprep.subr.bf16.mxu0 0
    %130 = vmatpush2.bf16.xpose.msra.mxu0 0
    %131 = vmatprep.subr.bf16.mxu0 0
    %132 = vmatpush2.bf16.xpose.msra.mxu0 0
    %133 = vmatprep.subr.bf16.mxu0 0
    %134 = vmatpush2.bf16.xpose.msra.mxu0 0
    %135 = vmatprep.mubr.bf16.mxu0 0
    %136 = vmatmul.mubr.bf16.gmra.mxu0 %v56
    %v137 = vpop.f32.mrf.mxu0
    %v138 = vadd.f32 0.0, %v137
    %v139 = vpop.f32.mrf.mxu0
    %v140 = vpop.f32.mrf.mxu0
    %v141 = vpop.f32.mrf.mxu0
    %142 = vdwg.mxu0
    %v143 = vlaneseq
    %v144 = vshrl.u32 %v143, 7
    %v145 = vlaneseq
    %v146 = vand.u32 %v145, 127
    %v147 = vmul.u32 %v144, 2
    %vm148 = vcmp.ge.s32.totalorder %v146, %v147
    %v149 = vadd.s32 %v147, 2
    %vm150 = vcmp.lt.s32.totalorder %v146, %v149
    %vm151 = vmand %vm148, %vm150
    %vm152 = vcmask 130048
    %v153 = vsel %vm152, %v95, -inf
    %154 = vmax.xlane.f32.xlu0 %v153
    %v155 = vpop.xlane.xlu0 %154
    %v156 = vrot.slane %v153, 4
    %v157 = vmax.f32 %v153, %v156
    %v158 = vrot.slane %v157, 2
    %v159 = vmax.f32 %v157, %v158
    %v160 = vrot.slane %v159, 1
    %v161 = vmax.f32 %v159, %v160
    %v162 = vsel %vm151, %v161, -1e+30
    %v163 = vsel %vm152, %v162, -inf
    %164 = vmax.xlane.f32.xlu0 %v163
    %v165 = vpop.xlane.xlu0 %164
    %v166 = vmax.f32 %v155, %v165
    %v167 = vsub.f32 %v95, %v166
    %v168 = vmul.f32 %v167, 1.442695
    %v169 = vpow.pop %v168
    %v170 = vsel %vm152, %v169, 0.0
    %171 = vadd.xlane.f32.xlu0 %v170
    %v172 = vpop.xlane.xlu0 %171
    %v173 = vsel %vm151, %v169, 0.0
    %v174 = vsel %vm152, %v173, 0.0
    %175 = vadd.xlane.f32.xlu0 %v174
    %v176 = vpop.xlane.xlu0 %175
    %v177 = vsel %vm151, %v166, -1e+30
    %v178 = vsel %vm152, %v177, -inf
    %v179 = vrot.slane %v178, 4
    %v180 = vmax.f32 %v178, %v179
    %v181 = vrot.slane %v180, 2
    %v182 = vmax.f32 %v180, %v181
    %v183 = vrot.slane %v182, 1
    %v184 = vmax.f32 %v182, %v183
    %v185 = vsub.f32 %v95, %v184
    %v186 = vmul.f32 %v185, 1.442695
    %v187 = vpow.pop %v186
    %v188 = vsel %vm152, %v187, 0.0
    %v189 = vrot.slane %v188, 4
    %v190 = vadd.f32 %v188, %v189
    %v191 = vrot.slane %v190, 2
    %v192 = vadd.f32 %v190, %v191
    %v193 = vrot.slane %v192, 1
    %v194 = vadd.f32 %v192, %v193
    %v195 = vsel %vm151, %v194, 0.0
    %v196 = vsel %vm152, %v195, 0.0
    %197 = vadd.xlane.f32.xlu0 %v196
    %v198 = vpop.xlane.xlu0 %197
    %v199 = vadd.f32 %v172, %v198
    %v200 = vlog2.pop %v199
    %v201 = vmul.f32 %v200, 0.6931472
    %v202 = vmax.f32 %v176, 1e-37
    %v203 = vlog2.pop %v202
    %v204 = vmul.f32 %v203, 0.6931472
    %v205 = vsub.f32 %v201, %v204
    %v206 = vrot.slane %v205, 4
    %v207 = vadd.f32 %v205, %v206
    %v208 = vrot.slane %v207, 2
    %v209 = vadd.f32 %v207, %v208
    %v210 = vrot.slane %v209, 1
    %v211 = vadd.f32 %v209, %v210
    %v212 = vsel %vm152, %v138, -inf
    %213 = vmax.xlane.f32.xlu0 %v212
    %v214 = vpop.xlane.xlu0 %213
    %v215 = vrot.slane %v212, 4
    %v216 = vmax.f32 %v212, %v215
    %v217 = vrot.slane %v216, 2
    %v218 = vmax.f32 %v216, %v217
    %v219 = vrot.slane %v218, 1
    %v220 = vmax.f32 %v218, %v219
    %v221 = vsel %vm151, %v220, -1e+30
    %v222 = vsel %vm152, %v221, -inf
    %223 = vmax.xlane.f32.xlu0 %v222
    %v224 = vpop.xlane.xlu0 %223
    %v225 = vmax.f32 %v214, %v224
    %v226 = vsub.f32 %v138, %v225
    %v227 = vmul.f32 %v226, 1.442695
    %v228 = vpow.pop %v227
    %v229 = vsel %vm152, %v228, 0.0
    %230 = vadd.xlane.f32.xlu0 %v229
    %v231 = vpop.xlane.xlu0 %230
    %v232 = vsel %vm151, %v228, 0.0
    %v233 = vsel %vm152, %v232, 0.0
    %234 = vadd.xlane.f32.xlu0 %v233
    %v235 = vpop.xlane.xlu0 %234
    %v236 = vsel %vm151, %v225, -1e+30
    %v237 = vsel %vm152, %v236, -inf
    %v238 = vrot.slane %v237, 4
    %v239 = vmax.f32 %v237, %v238
    %v240 = vrot.slane %v239, 2
    %v241 = vmax.f32 %v239, %v240
    %v242 = vrot.slane %v241, 1
    %v243 = vmax.f32 %v241, %v242
    %v244 = vsub.f32 %v138, %v243
    %v245 = vmul.f32 %v244, 1.442695
    %v246 = vpow.pop %v245
    %v247 = vsel %vm152, %v246, 0.0
    %v248 = vrot.slane %v247, 4
    %v249 = vadd.f32 %v247, %v248
    %v250 = vrot.slane %v249, 2
    %v251 = vadd.f32 %v249, %v250
    %v252 = vrot.slane %v251, 1
    %v253 = vadd.f32 %v251, %v252
    %v254 = vsel %vm151, %v253, 0.0
    %v255 = vsel %vm152, %v254, 0.0
    %256 = vadd.xlane.f32.xlu0 %v255
    %v257 = vpop.xlane.xlu0 %256
    %v258 = vadd.f32 %v231, %v257
    %v259 = vlog2.pop %v258
    %v260 = vmul.f32 %v259, 0.6931472
    %v261 = vmax.f32 %v235, 1e-37
    %v262 = vlog2.pop %v261
    %v263 = vmul.f32 %v262, 0.6931472
    %v264 = vsub.f32 %v260, %v263
    %v265 = vrot.slane %v264, 4
    %v266 = vadd.f32 %v264, %v265
    %v267 = vrot.slane %v266, 2
    %v268 = vadd.f32 %v266, %v267
    %v269 = vrot.slane %v268, 1
    %v270 = vadd.f32 %v268, %v269
    %v271 = vadd.f32 %v211, %v270
    %v272 = vmul.f32 %v271, 0.0625
    %vm273 = vcmask 0
    %274 = vst.msk [vmem:[#allocation8] sm:$0x1] %vm273, %v272
    // Predicated region
    $region26: #{tpu_custom_call.1} parent=1 // pred_check
      _
    $region27: #{tpu_custom_call.1} parent=1 // pred_check_branch
      %276 = sbr.rel (0) target = $region29
    $region28: #{tpu_custom_call.1} parent=1 // pred_region
      %s278 = ssub.s32 16, 16
      %279 = vsyncadd [#allocation4], %s278
      %s281 = sshll.u32 [#allocation8], 4
      %s282 = int_to_ptr.vmem [resolvable:$true] %s281
      %284 = dma.vmem_to_hbm [thread:$0]  %s282, 16, %s3, [#allocation4]
    $region29: #{tpu_custom_call.1} parent=1 // pred_fallthru
      _
    // Predicated region
    $region30: #{tpu_custom_call.1} parent=1 // pred_check
      _
    $region31: #{tpu_custom_call.1} parent=1 // pred_check_branch
      %286 = sbr.rel (0) target = $region33
    $region32: #{tpu_custom_call.1} parent=1 // pred_region
      %287 = dma.done [#allocation4], 16
    $region33: #{tpu_custom_call.1} parent=1 // pred_fallthru
      _
    %288 = vsyncpa [#allocation3], 1
    %289 = vsyncpa [#allocation6], 1
    %290 = vsyncpa [#allocation4], 1

</llo_original>
